<compile_context>
chip_gen: v5e
topology: v5e:2x2
jax: 0.10.0
libtpu: 0.0.40
codegen_flags: <defaults>
</compile_context>

<pallas_src>
import jax
import jax.numpy as jnp
from jax.experimental import pallas as pl
from jax.experimental.pallas import tpu as pltpu

IN_FEATURES = 768
OUT_FEATURES = 8
OUT_PADDED = 128        # lane-padded weight width (MXU-friendly RHS)
MAX_TB = 4096           # per-step batch rows: 2 * 4096*768*4B ~= 24 MiB double-buffered
SPLIT_THRESHOLD = 256   # above this, force >= 2 batch blocks (v7x dual-TC)


def linear_kernel(x_ref, w_ref, b_ref, o_ref):
    # x_ref: (TB, 768)  w_ref: (768, 128)  b_ref: (1, 8)  o_ref: (TB, 8)
    acc = jnp.dot(x_ref[...], w_ref[...], preferred_element_type=jnp.float32)
    o_ref[...] = (acc[:, :OUT_FEATURES] + b_ref[...]).astype(o_ref.dtype)


def prepare_params(weight, bias):
    """One-time re-layout of PyTorch nn.Linear params ([8,768] weight, [8] bias).

    Done at model-load time, NOT per forward call.
    """
    w_pad = jnp.zeros((IN_FEATURES, OUT_PADDED), dtype=weight.dtype)
    w_pad = w_pad.at[:, :OUT_FEATURES].set(weight.T)
    b2 = bias.reshape(1, OUT_FEATURES)
    return w_pad, b2


def _round_up(n, m):
    return ((n + m - 1) // m) * m


def emo_classifier_forward(x, w_pad, b2):
    """x: [B, 768], w_pad: [768, 128], b2: [1, 8] -> [B, 8]."""
    B = x.shape[0]
    x_item = jnp.dtype(x.dtype).itemsize

    # Batch tile: multiple of 8 sublanes, <= MAX_TB. For batches above
    # SPLIT_THRESHOLD rows use at least two blocks so both v7x TensorCores
    # get work. The final block may be ragged; Pallas masks its writeback.
    b8 = _round_up(B, 8)
    if b8 <= SPLIT_THRESHOLD:
        tb = b8
    else:
        tb = min(MAX_TB, _round_up(pl.cdiv(b8, 2), 8))
    grid = (pl.cdiv(B, tb),)

    cost = pl.CostEstimate(
        flops=2 * B * IN_FEATURES * OUT_FEATURES,
        transcendentals=0,
        bytes_accessed=(
            B * IN_FEATURES * x_item                                     # x read
            + IN_FEATURES * OUT_PADDED * jnp.dtype(w_pad.dtype).itemsize  # weight
            + OUT_FEATURES * jnp.dtype(b2.dtype).itemsize                 # bias
            + B * OUT_FEATURES * x_item                                   # output
        ),
    )

    return pl.pallas_call(
        linear_kernel,
        out_shape=jax.ShapeDtypeStruct((B, OUT_FEATURES), x.dtype),
        grid_spec=pl.GridSpec(
            grid=grid,
            in_specs=[
                pl.BlockSpec((tb, IN_FEATURES), lambda i: (i, 0)),
                pl.BlockSpec((IN_FEATURES, OUT_PADDED), lambda i: (0, 0)),
                pl.BlockSpec((1, OUT_FEATURES), lambda i: (0, 0)),
            ],
            out_specs=pl.BlockSpec((tb, OUT_FEATURES), lambda i: (i, 0)),
        ),
        compiler_params=pltpu.CompilerParams(
            # parallel: independent batch blocks -> v7x shards over its 2 TCs
            dimension_semantics=("parallel",),
            # 24 MiB double-buffered input at TB=4096 + headroom; fits v7x's
            # 64 MiB per-TC VMEM and covers v5e's 16 MiB default scoped limit.
            vmem_limit_bytes=48 * 1024 * 1024,
        ),
        cost_estimate=cost,
    )(x, w_pad, b2)


if __name__ == "__main__":
    key = jax.random.PRNGKey(0)
    kx, kw, kb = jax.random.split(key, 3)

    B = 8  # small batch
    x = jax.random.normal(kx, (B, IN_FEATURES), dtype=jnp.float32)
    # Deterministic synthetic parameters (nn.Linear-shaped).
    bound = 1.0 / (IN_FEATURES ** 0.5)
    weight = jax.random.uniform(
        kw, (OUT_FEATURES, IN_FEATURES), dtype=jnp.float32,
        minval=-bound, maxval=bound)
    bias = jax.random.uniform(
        kb, (OUT_FEATURES,), dtype=jnp.float32, minval=-bound, maxval=bound)

    # One-time param re-layout (outside the per-call hot path).
    w_pad, b2 = jax.block_until_ready(prepare_params(weight, bias))

    out = jax.block_until_ready(emo_classifier_forward(x, w_pad, b2))
    ref = x @ weight.T + bias
    assert out.shape == (B, OUT_FEATURES)
    assert jnp.allclose(out, ref, atol=1e-4, rtol=1e-4)

    # Batch that is NOT a multiple of the sublane count: exercises the masked
    # ragged final block (no jnp.pad copy anywhere).
    B2 = 37
    x2 = jax.random.normal(jax.random.PRNGKey(1), (B2, IN_FEATURES),
                           dtype=jnp.float32)
    out2 = jax.block_until_ready(emo_classifier_forward(x2, w_pad, b2))
    ref2 = x2 @ weight.T + bias
    assert out2.shape == (B2, OUT_FEATURES)
    assert jnp.allclose(out2, ref2, atol=1e-4, rtol=1e-4)

    # Batch above the split threshold: exercises a multi-block "parallel" grid
    # (both v7x TensorCores) plus a ragged last block.
    B3 = 300
    x3 = jax.random.normal(jax.random.PRNGKey(2), (B3, IN_FEATURES),
                           dtype=jnp.float32)
    out3 = jax.block_until_ready(emo_classifier_forward(x3, w_pad, b2))
    ref3 = x3 @ weight.T + bias
    assert out3.shape == (B3, OUT_FEATURES)
    assert jnp.allclose(out3, ref3, atol=1e-4, rtol=1e-4)

    print("KERNEL_OK")
</pallas_src>

<mosaic_0001>
module attributes {stable_mosaic.version = 11 : i64} {
  func.func @linear_kernel(%arg0: i32, %arg1: memref<8x768xf32, #tpu.memory_space<vmem>>, %arg2: memref<768x128xf32, #tpu.memory_space<vmem>>, %arg3: memref<1x8xf32, #tpu.memory_space<vmem>>, %arg4: memref<8x8xf32, #tpu.memory_space<vmem>>) attributes {dimension_semantics = [#tpu.dimension_semantics<parallel>], iteration_bounds = array<i64: 1>, scalar_prefetch = 0 : i64, scratch_operands = 0 : i64, tpu.core_type = #tpu.core_type<tc>, window_params = [{transform_indices = @transform_0, window_bounds = array<i64: 8, 768>}, {pipeline_mode = #tpu.pipeline_mode<synchronous>, transform_indices = @transform_1, window_bounds = array<i64: 768, 128>}, {pipeline_mode = #tpu.pipeline_mode<synchronous>, transform_indices = @transform_2, window_bounds = array<i64: 1, 8>}, {transform_indices = @transform_3, window_bounds = array<i64: 8, 8>}]} {
    %c0 = arith.constant 0 : index
    %c0_0 = arith.constant 0 : index
    %0 = vector.load %arg1[%c0, %c0_0] : memref<8x768xf32, #tpu.memory_space<vmem>>, vector<8x768xf32>
    %c0_1 = arith.constant 0 : index
    %c0_2 = arith.constant 0 : index
    %1 = vector.load %arg2[%c0_1, %c0_2] : memref<768x128xf32, #tpu.memory_space<vmem>>, vector<768x128xf32>
    %cst = arith.constant dense<0.000000e+00> : vector<8x128xf32>
    %2 = tpu.matmul %0, %1, %cst {dimension_numbers = #tpu.dot_dimension_numbers<[1], [0], [0], [1], [0, 0, 1, 1], [], []>} : vector<8x768xf32>, vector<768x128xf32>, vector<8x128xf32> -> vector<8x128xf32>
    %3 = vector.extract_strided_slice %2 {offsets = [0, 0], sizes = [8, 8], strides = [1, 1]} : vector<8x128xf32> to vector<8x8xf32>
    %c0_3 = arith.constant 0 : index
    %c0_4 = arith.constant 0 : index
    %4 = vector.load %arg3[%c0_3, %c0_4] : memref<1x8xf32, #tpu.memory_space<vmem>>, vector<1x8xf32>
    %5 = vector.broadcast %4 : vector<1x8xf32> to vector<8x8xf32>
    %6 = arith.addf %3, %5 : vector<8x8xf32>
    %c0_5 = arith.constant 0 : index
    %c0_6 = arith.constant 0 : index
    %7 = vector.load %arg4[%c0_5, %c0_6] : memref<8x8xf32, #tpu.memory_space<vmem>>, vector<8x8xf32>
    tpu.vector_store %arg4[%c0_5, %c0_6], %6 {strides = array<i32>} : memref<8x8xf32, #tpu.memory_space<vmem>>, vector<8x8xf32>,
    return
  }
  func.func @transform_0(%arg0: i32) -> (i32, i32) {
    %c0_i32 = arith.constant 0 : i32
    %c0_i32_0 = arith.constant 0 : i32
    return %arg0, %c0_i32 : i32, i32
  }
  func.func @transform_1(%arg0: i32) -> (i32, i32) {
    %c0_i32 = arith.constant 0 : i32
    %c0_i32_0 = arith.constant 0 : i32
    %c0_i32_1 = arith.constant 0 : i32
    return %c0_i32, %c0_i32_0 : i32, i32
  }
  func.func @transform_2(%arg0: i32) -> (i32, i32) {
    %c0_i32 = arith.constant 0 : i32
    %c0_i32_0 = arith.constant 0 : i32
    %c0_i32_1 = arith.constant 0 : i32
    return %c0_i32, %c0_i32_0 : i32, i32
  }
  func.func @transform_3(%arg0: i32) -> (i32, i32) {
    %c0_i32 = arith.constant 0 : i32
    %c0_i32_0 = arith.constant 0 : i32
    return %arg0, %c0_i32 : i32, i32
  }
}

</mosaic_0001>

<llo_original>
// kernel: tpu_custom_call.1
$region0: #{tpu_custom_call.1}
  #allocation0 [shape = 'u32[]', space=smem, size = 0x4, offset = 0x4, fixed_abs, tag = 'smem constant byte address 0x4 - core index']
  #allocation1 [shape = 'u32[72,128]{1,0:T(1,128)}', space=vmem, size = 0x9000, scoped, tag = 'internal scratch']
  %s0 = inlined_call_operand.hbm [shape: f32[8,768], index: 0, kind: input, shape index: {}]
  %s1 = inlined_call_operand.hbm [shape: f32[768,128], index: 1, kind: input, shape index: {}]
  %s2 = inlined_call_operand.vmem [shape: f32[1,8], index: 2, kind: input, shape index: {}]
  %s3 = inlined_call_operand.hbm [shape: f32[8,8], index: 3, kind: output, shape index: {}]
  %s4 = sld [smem:[#allocation0]]
  $region30: #{tpu_custom_call.1} parent=0
    _
  %s6 = ssub.s32 1, %s4
  %s7 = scalar_select 0, %s6, %s4
  $region1: #{tpu_custom_call.1} parent=0
    #allocation2 [shape = 'u8[24576]{0}', space=vmem, size = 0x6000, scoped, tag = 'input window, operand 0, single buffered']
    #allocation3 [shape = 's32[1]{0}', space=sflag, size = 0x4, scoped, tag = 'scoped memory for tpu_custom_call.1']
    #allocation4 [shape = 's32[1]{0}', space=sflag, size = 0x4, scoped, tag = 'scoped memory for tpu_custom_call.1']
    #allocation5 [shape = 'u8[393216]{0}', space=vmem, size = 0x60000, scoped, tag = 'input window, operand 1, single buffered']
    #allocation6 [shape = 's32[1]{0}', space=sflag, size = 0x4, scoped, tag = 'scoped memory for tpu_custom_call.1']
    #allocation7 [shape = 'u8[4096]{0}', space=vmem, size = 0x1000, scoped, tag = 'output window, operand 0, single buffered']
    %8 = vsyncpa [#allocation3], 0
    %9 = vsyncpa [#allocation6], 0
    %10 = vsyncpa [#allocation4], 0
    // Predicated region
    $region2: #{tpu_custom_call.1} parent=1 // pred_check
      _
    $region3: #{tpu_custom_call.1} parent=1 // pred_check_branch
      %12 = sbr.rel (0) target = $region5
    $region4: #{tpu_custom_call.1} parent=1 // pred_region
      %14 = vsyncadd [#allocation3], 0
      %s16 = sshll.u32 %s0, 4
      %s17 = int_to_ptr.hbm [resolvable:$true] %s16
      %s18 = sshll.u32 [#allocation2], 4
      %s19 = int_to_ptr.vmem [resolvable:$true] %s18
      %21 = dma.hbm_to_vmem [thread:$0]  %s17, 768, %s19, [#allocation3]
    $region5: #{tpu_custom_call.1} parent=1 // pred_fallthru
      _
    // Predicated region
    $region6: #{tpu_custom_call.1} parent=1 // pred_check
      _
    $region7: #{tpu_custom_call.1} parent=1 // pred_check_branch
      %23 = sbr.rel (0) target = $region9
    $region8: #{tpu_custom_call.1} parent=1 // pred_region
      %25 = vsyncadd [#allocation6], 0
      %s26 = sshll.u32 %s1, 4
      %s27 = int_to_ptr.hbm [resolvable:$true] %s26
      %s28 = sshll.u32 [#allocation5], 4
      %s29 = int_to_ptr.vmem [resolvable:$true] %s28
      %34 = dma.hbm_to_vmem [thread:$0]  %s27, 12288, %s29, [#allocation6], 128, 128, 8
    $region9: #{tpu_custom_call.1} parent=1 // pred_fallthru
      _
    // Predicated region
    $region10: #{tpu_custom_call.1} parent=1 // pred_check
      _
    $region11: #{tpu_custom_call.1} parent=1 // pred_check_branch
      %36 = sbr.rel (0) target = $region13
    $region12: #{tpu_custom_call.1} parent=1 // pred_region
      _
    $region13: #{tpu_custom_call.1} parent=1 // pred_fallthru
      _
    // Predicated region
    $region14: #{tpu_custom_call.1} parent=1 // pred_check
      _
    $region15: #{tpu_custom_call.1} parent=1 // pred_check_branch
      %38 = sbr.rel (0) target = $region17
    $region16: #{tpu_custom_call.1} parent=1 // pred_region
      %40 = dma.done [#allocation3], 768
    $region17: #{tpu_custom_call.1} parent=1 // pred_fallthru
      _
    // Predicated region
    $region18: #{tpu_custom_call.1} parent=1 // pred_check
      _
    $region19: #{tpu_custom_call.1} parent=1 // pred_check_branch
      %42 = sbr.rel (0) target = $region21
    $region20: #{tpu_custom_call.1} parent=1 // pred_region
      %44 = dma.done [#allocation6], 12288
    $region21: #{tpu_custom_call.1} parent=1 // pred_fallthru
      _
    %v45 = vld [vmem:[#allocation2] sm:$0xff]
    %v46 = vld [vmem:[#allocation2 + $0x8] sm:$0xff]
    %v47 = vld [vmem:[#allocation2 + $0x10] sm:$0xff]
    %v48 = vld [vmem:[#allocation2 + $0x18] sm:$0xff]
    %v49 = vld [vmem:[#allocation2 + $0x20] sm:$0xff]
    %v50 = vld [vmem:[#allocation2 + $0x28] sm:$0xff]
    %v51 = vld [vmem:[#allocation5] sm:$0xff]
    %v52 = vld [vmem:[#allocation5 + $0x8] sm:$0xff]
    %v53 = vld [vmem:[#allocation5 + $0x10] sm:$0xff]
    %v54 = vld [vmem:[#allocation5 + $0x18] sm:$0xff]
    %v55 = vld [vmem:[#allocation5 + $0x20] sm:$0xff]
    %v56 = vld [vmem:[#allocation5 + $0x28] sm:$0xff]
    %v57 = vld [vmem:[#allocation5 + $0x30] sm:$0xff]
    %v58 = vld [vmem:[#allocation5 + $0x38] sm:$0xff]
    %v59 = vld [vmem:[#allocation5 + $0x40] sm:$0xff]
    %v60 = vld [vmem:[#allocation5 + $0x48] sm:$0xff]
    %v61 = vld [vmem:[#allocation5 + $0x50] sm:$0xff]
    %v62 = vld [vmem:[#allocation5 + $0x58] sm:$0xff]
    %v63 = vld [vmem:[#allocation5 + $0x60] sm:$0xff]
    %v64 = vld [vmem:[#allocation5 + $0x68] sm:$0xff]
    %v65 = vld [vmem:[#allocation5 + $0x70] sm:$0xff]
    %v66 = vld [vmem:[#allocation5 + $0x78] sm:$0xff]
    %v67 = vld [vmem:[#allocation5 + $0x80] sm:$0xff]
    %v68 = vld [vmem:[#allocation5 + $0x88] sm:$0xff]
    %v69 = vld [vmem:[#allocation5 + $0x90] sm:$0xff]
    %v70 = vld [vmem:[#allocation5 + $0x98] sm:$0xff]
    %v71 = vld [vmem:[#allocation5 + $0xa0] sm:$0xff]
    %v72 = vld [vmem:[#allocation5 + $0xa8] sm:$0xff]
    %v73 = vld [vmem:[#allocation5 + $0xb0] sm:$0xff]
    %v74 = vld [vmem:[#allocation5 + $0xb8] sm:$0xff]
    %v75 = vld [vmem:[#allocation5 + $0xc0] sm:$0xff]
    %v76 = vld [vmem:[#allocation5 + $0xc8] sm:$0xff]
    %v77 = vld [vmem:[#allocation5 + $0xd0] sm:$0xff]
    %v78 = vld [vmem:[#allocation5 + $0xd8] sm:$0xff]
    %v79 = vld [vmem:[#allocation5 + $0xe0] sm:$0xff]
    %v80 = vld [vmem:[#allocation5 + $0xe8] sm:$0xff]
    %v81 = vld [vmem:[#allocation5 + $0xf0] sm:$0xff]
    %v82 = vld [vmem:[#allocation5 + $0xf8] sm:$0xff]
    %v83 = vld [vmem:[#allocation5 + $0x100] sm:$0xff]
    %v84 = vld [vmem:[#allocation5 + $0x108] sm:$0xff]
    %v85 = vld [vmem:[#allocation5 + $0x110] sm:$0xff]
    %v86 = vld [vmem:[#allocation5 + $0x118] sm:$0xff]
    %v87 = vld [vmem:[#allocation5 + $0x120] sm:$0xff]
    %v88 = vld [vmem:[#allocation5 + $0x128] sm:$0xff]
    %v89 = vld [vmem:[#allocation5 + $0x130] sm:$0xff]
    %v90 = vld [vmem:[#allocation5 + $0x138] sm:$0xff]
    %v91 = vld [vmem:[#allocation5 + $0x140] sm:$0xff]
    %v92 = vld [vmem:[#allocation5 + $0x148] sm:$0xff]
    %v93 = vld [vmem:[#allocation5 + $0x150] sm:$0xff]
    %v94 = vld [vmem:[#allocation5 + $0x158] sm:$0xff]
    %v95 = vld [vmem:[#allocation5 + $0x160] sm:$0xff]
    %v96 = vld [vmem:[#allocation5 + $0x168] sm:$0xff]
    %v97 = vld [vmem:[#allocation5 + $0x170] sm:$0xff]
    %v98 = vld [vmem:[#allocation5 + $0x178] sm:$0xff]
    %v99 = vld [vmem:[#allocation5 + $0x180] sm:$0xff]
    %v100 = vld [vmem:[#allocation5 + $0x188] sm:$0xff]
    %v101 = vld [vmem:[#allocation5 + $0x190] sm:$0xff]
    %v102 = vld [vmem:[#allocation5 + $0x198] sm:$0xff]
    %v103 = vld [vmem:[#allocation5 + $0x1a0] sm:$0xff]
    %v104 = vld [vmem:[#allocation5 + $0x1a8] sm:$0xff]
    %v105 = vld [vmem:[#allocation5 + $0x1b0] sm:$0xff]
    %v106 = vld [vmem:[#allocation5 + $0x1b8] sm:$0xff]
    %v107 = vld [vmem:[#allocation5 + $0x1c0] sm:$0xff]
    %v108 = vld [vmem:[#allocation5 + $0x1c8] sm:$0xff]
    %v109 = vld [vmem:[#allocation5 + $0x1d0] sm:$0xff]
    %v110 = vld [vmem:[#allocation5 + $0x1d8] sm:$0xff]
    %v111 = vld [vmem:[#allocation5 + $0x1e0] sm:$0xff]
    %v112 = vld [vmem:[#allocation5 + $0x1e8] sm:$0xff]
    %v113 = vld [vmem:[#allocation5 + $0x1f0] sm:$0xff]
    %v114 = vld [vmem:[#allocation5 + $0x1f8] sm:$0xff]
    %v115 = vld [vmem:[#allocation5 + $0x200] sm:$0xff]
    %v116 = vld [vmem:[#allocation5 + $0x208] sm:$0xff]
    %v117 = vld [vmem:[#allocation5 + $0x210] sm:$0xff]
    %v118 = vld [vmem:[#allocation5 + $0x218] sm:$0xff]
    %v119 = vld [vmem:[#allocation5 + $0x220] sm:$0xff]
    %v120 = vld [vmem:[#allocation5 + $0x228] sm:$0xff]
    %v121 = vld [vmem:[#allocation5 + $0x230] sm:$0xff]
    %v122 = vld [vmem:[#allocation5 + $0x238] sm:$0xff]
    %v123 = vld [vmem:[#allocation5 + $0x240] sm:$0xff]
    %v124 = vld [vmem:[#allocation5 + $0x248] sm:$0xff]
    %v125 = vld [vmem:[#allocation5 + $0x250] sm:$0xff]
    %v126 = vld [vmem:[#allocation5 + $0x258] sm:$0xff]
    %v127 = vld [vmem:[#allocation5 + $0x260] sm:$0xff]
    %v128 = vld [vmem:[#allocation5 + $0x268] sm:$0xff]
    %v129 = vld [vmem:[#allocation5 + $0x270] sm:$0xff]
    %v130 = vld [vmem:[#allocation5 + $0x278] sm:$0xff]
    %v131 = vld [vmem:[#allocation5 + $0x280] sm:$0xff]
    %v132 = vld [vmem:[#allocation5 + $0x288] sm:$0xff]
    %v133 = vld [vmem:[#allocation5 + $0x290] sm:$0xff]
    %v134 = vld [vmem:[#allocation5 + $0x298] sm:$0xff]
    %v135 = vld [vmem:[#allocation5 + $0x2a0] sm:$0xff]
    %v136 = vld [vmem:[#allocation5 + $0x2a8] sm:$0xff]
    %v137 = vld [vmem:[#allocation5 + $0x2b0] sm:$0xff]
    %v138 = vld [vmem:[#allocation5 + $0x2b8] sm:$0xff]
    %v139 = vld [vmem:[#allocation5 + $0x2c0] sm:$0xff]
    %v140 = vld [vmem:[#allocation5 + $0x2c8] sm:$0xff]
    %v141 = vld [vmem:[#allocation5 + $0x2d0] sm:$0xff]
    %v142 = vld [vmem:[#allocation5 + $0x2d8] sm:$0xff]
    %v143 = vld [vmem:[#allocation5 + $0x2e0] sm:$0xff]
    %v144 = vld [vmem:[#allocation5 + $0x2e8] sm:$0xff]
    %v145 = vld [vmem:[#allocation5 + $0x2f0] sm:$0xff]
    %v146 = vld [vmem:[#allocation5 + $0x2f8] sm:$0xff]
    %147 = vmatpush.msra.mxu0 %v66
    %148 = vmatpush.msra.mxu0 %v65
    %149 = vmatpush.msra.mxu0 %v64
    %150 = vmatpush.msra.mxu0 %v63
    %151 = vmatpush.msra.mxu0 %v62
    %152 = vmatpush.msra.mxu0 %v61
    %153 = vmatpush.msra.mxu0 %v60
    %154 = vmatpush.msra.mxu0 %v59
    %155 = vmatpush.msra.mxu0 %v58
    %156 = vmatpush.msra.mxu0 %v57
    %157 = vmatpush.msra.mxu0 %v56
    %158 = vmatpush.msra.mxu0 %v55
    %159 = vmatpush.msra.mxu0 %v54
    %160 = vmatpush.msra.mxu0 %v53
    %161 = vmatpush.msra.mxu0 %v52
    %162 = vmatpush.msra.mxu0 %v51
    %163 = vmatmul.f32.gmra.mxu0 %v45
    %v164 = vpop.f32.mrf.mxu0
    %v165 = vadd.f32 0.0, %v164
    %166 = vdwg.mxu0
    %167 = vmatpush.msra.mxu0 %v82
    %168 = vmatpush.msra.mxu0 %v81
    %169 = vmatpush.msra.mxu0 %v80
    %170 = vmatpush.msra.mxu0 %v79
    %171 = vmatpush.msra.mxu0 %v78
    %172 = vmatpush.msra.mxu0 %v77
    %173 = vmatpush.msra.mxu0 %v76
    %174 = vmatpush.msra.mxu0 %v75
    %175 = vmatpush.msra.mxu0 %v74
    %176 = vmatpush.msra.mxu0 %v73
    %177 = vmatpush.msra.mxu0 %v72
    %178 = vmatpush.msra.mxu0 %v71
    %179 = vmatpush.msra.mxu0 %v70
    %180 = vmatpush.msra.mxu0 %v69
    %181 = vmatpush.msra.mxu0 %v68
    %182 = vmatpush.msra.mxu0 %v67
    %183 = vmatmul.f32.gmra.mxu0 %v46
    %v184 = vpop.f32.mrf.mxu0
    %v185 = vadd.f32 %v165, %v184
    %186 = vdwg.mxu0
    %187 = vmatpush.msra.mxu0 %v98
    %188 = vmatpush.msra.mxu0 %v97
    %189 = vmatpush.msra.mxu0 %v96
    %190 = vmatpush.msra.mxu0 %v95
    %191 = vmatpush.msra.mxu0 %v94
    %192 = vmatpush.msra.mxu0 %v93
    %193 = vmatpush.msra.mxu0 %v92
    %194 = vmatpush.msra.mxu0 %v91
    %195 = vmatpush.msra.mxu0 %v90
    %196 = vmatpush.msra.mxu0 %v89
    %197 = vmatpush.msra.mxu0 %v88
    %198 = vmatpush.msra.mxu0 %v87
    %199 = vmatpush.msra.mxu0 %v86
    %200 = vmatpush.msra.mxu0 %v85
    %201 = vmatpush.msra.mxu0 %v84
    %202 = vmatpush.msra.mxu0 %v83
    %203 = vmatmul.f32.gmra.mxu0 %v47
    %v204 = vpop.f32.mrf.mxu0
    %v205 = vadd.f32 %v185, %v204
    %206 = vdwg.mxu0
    %207 = vmatpush.msra.mxu0 %v114
    %208 = vmatpush.msra.mxu0 %v113
    %209 = vmatpush.msra.mxu0 %v112
    %210 = vmatpush.msra.mxu0 %v111
    %211 = vmatpush.msra.mxu0 %v110
    %212 = vmatpush.msra.mxu0 %v109
    %213 = vmatpush.msra.mxu0 %v108
    %214 = vmatpush.msra.mxu0 %v107
    %215 = vmatpush.msra.mxu0 %v106
    %216 = vmatpush.msra.mxu0 %v105
    %217 = vmatpush.msra.mxu0 %v104
    %218 = vmatpush.msra.mxu0 %v103
    %219 = vmatpush.msra.mxu0 %v102
    %220 = vmatpush.msra.mxu0 %v101
    %221 = vmatpush.msra.mxu0 %v100
    %222 = vmatpush.msra.mxu0 %v99
    %223 = vmatmul.f32.gmra.mxu0 %v48
    %v224 = vpop.f32.mrf.mxu0
    %v225 = vadd.f32 %v205, %v224
    %226 = vdwg.mxu0
    %227 = vmatpush.msra.mxu0 %v130
    %228 = vmatpush.msra.mxu0 %v129
    %229 = vmatpush.msra.mxu0 %v128
    %230 = vmatpush.msra.mxu0 %v127
    %231 = vmatpush.msra.mxu0 %v126
    %232 = vmatpush.msra.mxu0 %v125
    %233 = vmatpush.msra.mxu0 %v124
    %234 = vmatpush.msra.mxu0 %v123
    %235 = vmatpush.msra.mxu0 %v122
    %236 = vmatpush.msra.mxu0 %v121
    %237 = vmatpush.msra.mxu0 %v120
    %238 = vmatpush.msra.mxu0 %v119
    %239 = vmatpush.msra.mxu0 %v118
    %240 = vmatpush.msra.mxu0 %v117
    %241 = vmatpush.msra.mxu0 %v116
    %242 = vmatpush.msra.mxu0 %v115
    %243 = vmatmul.f32.gmra.mxu0 %v49
    %v244 = vpop.f32.mrf.mxu0
    %v245 = vadd.f32 %v225, %v244
    %246 = vdwg.mxu0
    %247 = vmatpush.msra.mxu0 %v146
    %248 = vmatpush.msra.mxu0 %v145
    %249 = vmatpush.msra.mxu0 %v144
    %250 = vmatpush.msra.mxu0 %v143
    %251 = vmatpush.msra.mxu0 %v142
    %252 = vmatpush.msra.mxu0 %v141
    %253 = vmatpush.msra.mxu0 %v140
    %254 = vmatpush.msra.mxu0 %v139
    %255 = vmatpush.msra.mxu0 %v138
    %256 = vmatpush.msra.mxu0 %v137
    %257 = vmatpush.msra.mxu0 %v136
    %258 = vmatpush.msra.mxu0 %v135
    %259 = vmatpush.msra.mxu0 %v134
    %260 = vmatpush.msra.mxu0 %v133
    %261 = vmatpush.msra.mxu0 %v132
    %262 = vmatpush.msra.mxu0 %v131
    %263 = vmatmul.f32.gmra.mxu0 %v50
    %v264 = vpop.f32.mrf.mxu0
    %v265 = vadd.f32 %v245, %v264
    %266 = vdwg.mxu0
    %v267 = vld [vmem:[%s2] sm:$0x1]
    %v269 = vperm.slane %v267, 0
    %v271 = vadd.f32 %v265, %v269
    %vm272 = vcmask 64512
    %273 = vst.msk [vmem:[#allocation7] sm:$0xff] %vm272, %v271
    // Predicated region
    $region22: #{tpu_custom_call.1} parent=1 // pred_check
      _
    $region23: #{tpu_custom_call.1} parent=1 // pred_check_branch
      %275 = sbr.rel (0) target = $region25
    $region24: #{tpu_custom_call.1} parent=1 // pred_region
      %277 = vsyncadd [#allocation4], 0
      %s279 = sshll.u32 [#allocation7], 4
      %s280 = int_to_ptr.vmem [resolvable:$true] %s279
      %s281 = sshll.u32 %s3, 4
      %s282 = int_to_ptr.hbm [resolvable:$true] %s281
      %284 = dma.vmem_to_hbm [thread:$0]  %s280, 128, %s282, [#allocation4]
    $region25: #{tpu_custom_call.1} parent=1 // pred_fallthru
      _
    // Predicated region
    $region26: #{tpu_custom_call.1} parent=1 // pred_check
      _
    $region27: #{tpu_custom_call.1} parent=1 // pred_check_branch
      %286 = sbr.rel (0) target = $region29
    $region28: #{tpu_custom_call.1} parent=1 // pred_region
      %288 = dma.done [#allocation4], 128
    $region29: #{tpu_custom_call.1} parent=1 // pred_fallthru
      _
    %289 = vsyncpa [#allocation3], 1
    %290 = vsyncpa [#allocation6], 1
    %291 = vsyncpa [#allocation4], 1

</llo_original>
